<compile_context>
chip_gen: v7x
topology: tpu7x:2x2x1
jax: 0.10.0
libtpu: 0.0.40
codegen_flags: <defaults>
</compile_context>

<pallas_src>
import jax
import jax.numpy as jnp
from jax.experimental import pallas as pl
from jax.experimental.pallas import tpu as pltpu

# small shapes consistent with the transformer assignment: d_model=32, vocab=512
B, T, D, V = 2, 8, 32, 512


def _generator_kernel(x_ref, w_ref, b_ref, o_ref):
    # x_ref: [TM, D]  w_ref: [D, V]  b_ref: [1, V]  o_ref: [TM, V]
    x = x_ref[...].astype(jnp.float32)
    logits = jnp.dot(x, w_ref[...], preferred_element_type=jnp.float32) + b_ref[...]
    # numerically-stable log_softmax along the vocab (last) axis, all in f32
    m = jnp.max(logits, axis=-1, keepdims=True)
    s = logits - m
    lse = jnp.log(jnp.sum(jnp.exp(s), axis=-1, keepdims=True))
    o_ref[...] = (s - lse).astype(o_ref.dtype)


def generator(x, w, b, *, block_rows=256):
    """log_softmax(x @ w + b, axis=-1) for x of shape [..., d_model]."""
    lead = x.shape[:-1]
    d_model = x.shape[-1]
    vocab = w.shape[-1]

    xf = x.reshape(-1, d_model)          # fold batch/time into rows
    n = xf.shape[0]
    tm = min(block_rows, n)
    assert n % tm == 0 and (tm % 8 == 0 or tm == n), "row count must tile cleanly"
    grid = (n // tm,)

    out = pl.pallas_call(
        _generator_kernel,
        out_shape=jax.ShapeDtypeStruct((n, vocab), x.dtype),
        grid_spec=pltpu.PrefetchScalarGridSpec(
            num_scalar_prefetch=0,
            grid=grid,
            in_specs=[
                pl.BlockSpec((tm, d_model), lambda i: (i, 0)),    # x rows (tiled)
                pl.BlockSpec((d_model, vocab), lambda i: (0, 0)),  # W (resident)
                pl.BlockSpec((1, vocab), lambda i: (0, 0)),        # b (resident)
            ],
            out_specs=pl.BlockSpec((tm, vocab), lambda i: (i, 0)),
        ),
        compiler_params=pltpu.CompilerParams(
            dimension_semantics=("parallel",)),   # row tiles independent -> megacore on v7x
    )(xf, w, b)

    return out.reshape(*lead, vocab)


# ---------------- pure-JAX reference (mirrors the PyTorch forward) ----------------
def reference_generator(x, w, b):
    return jax.nn.log_softmax(x @ w + b, axis=-1)


if __name__ == "__main__":
    key = jax.random.PRNGKey(0)
    k0, k1, k2 = jax.random.split(key, 3)

    x = jax.random.normal(k0, (B, T, D), jnp.float32)
    w = 0.1 * jax.random.normal(k1, (D, V), jnp.float32)   # torch Linear weight, pre-transposed to [in, out]
    b = 0.1 * jax.random.normal(k2, (1, V), jnp.float32)

    out = jax.block_until_ready(generator(x, w, b))
    ref = reference_generator(x, w, b)

    assert out.shape == (B, T, V)
    assert jnp.allclose(out, ref, atol=1e-4, rtol=1e-4), float(jnp.max(jnp.abs(out - ref)))
    # rows of exp(log_softmax) must sum to 1
    assert jnp.allclose(jnp.sum(jnp.exp(out), axis=-1), 1.0, atol=1e-4)

    print("KERNEL_OK")
</pallas_src>

<mosaic_0001>
module attributes {stable_mosaic.version = 11 : i64} {
  func.func @_generator_kernel(%arg0: i32, %arg1: memref<16x32xf32, #tpu.memory_space<vmem>>, %arg2: memref<32x512xf32, #tpu.memory_space<vmem>>, %arg3: memref<1x512xf32, #tpu.memory_space<vmem>>, %arg4: memref<16x512xf32, #tpu.memory_space<vmem>>) attributes {dimension_semantics = [#tpu.dimension_semantics<parallel>], iteration_bounds = array<i64: 1>, scalar_prefetch = 0 : i64, scratch_operands = 0 : i64, tpu.core_type = #tpu.core_type<tc>, window_params = [{transform_indices = @transform_0, window_bounds = array<i64: 16, 32>}, {pipeline_mode = #tpu.pipeline_mode<synchronous>, transform_indices = @transform_1, window_bounds = array<i64: 32, 512>}, {pipeline_mode = #tpu.pipeline_mode<synchronous>, transform_indices = @transform_2, window_bounds = array<i64: 1, 512>}, {transform_indices = @transform_3, window_bounds = array<i64: 16, 512>}]} {
    %c0 = arith.constant 0 : index
    %c0_0 = arith.constant 0 : index
    %0 = vector.load %arg1[%c0, %c0_0] : memref<16x32xf32, #tpu.memory_space<vmem>>, vector<16x32xf32>
    %c0_1 = arith.constant 0 : index
    %c0_2 = arith.constant 0 : index
    %1 = vector.load %arg2[%c0_1, %c0_2] : memref<32x512xf32, #tpu.memory_space<vmem>>, vector<32x512xf32>
    %cst = arith.constant dense<0.000000e+00> : vector<16x512xf32>
    %2 = tpu.matmul %0, %1, %cst {dimension_numbers = #tpu.dot_dimension_numbers<[1], [0], [0], [1], [0, 0, 1, 1], [], []>} : vector<16x32xf32>, vector<32x512xf32>, vector<16x512xf32> -> vector<16x512xf32>
    %c0_3 = arith.constant 0 : index
    %c0_4 = arith.constant 0 : index
    %3 = vector.load %arg3[%c0_3, %c0_4] : memref<1x512xf32, #tpu.memory_space<vmem>>, vector<1x512xf32>
    %4 = vector.broadcast %3 : vector<1x512xf32> to vector<16x512xf32>
    %5 = arith.addf %2, %4 : vector<16x512xf32>
    %cst_5 = arith.constant dense<0xFF800000> : vector<16xf32>
    %6 = vector.multi_reduction <maximumf>, %5, %cst_5 [1] : vector<16x512xf32> to vector<16xf32>
    %7 = vector.shape_cast %6 : vector<16xf32> to vector<16x1xf32>
    %8 = vector.broadcast %7 : vector<16x1xf32> to vector<16x512xf32>
    %9 = arith.subf %5, %8 : vector<16x512xf32>
    %10 = math.exp %9 : vector<16x512xf32>
    %cst_6 = arith.constant dense<0.000000e+00> : vector<16xf32>
    %11 = vector.multi_reduction <add>, %10, %cst_6 [1] : vector<16x512xf32> to vector<16xf32>
    %12 = vector.shape_cast %11 : vector<16xf32> to vector<16x1xf32>
    %13 = math.log %12 : vector<16x1xf32>
    %14 = vector.broadcast %13 : vector<16x1xf32> to vector<16x512xf32>
    %15 = arith.subf %9, %14 : vector<16x512xf32>
    %c0_7 = arith.constant 0 : index
    %c0_8 = arith.constant 0 : index
    %16 = vector.load %arg4[%c0_7, %c0_8] : memref<16x512xf32, #tpu.memory_space<vmem>>, vector<16x512xf32>
    tpu.vector_store %arg4[%c0_7, %c0_8], %15 {strides = array<i32>} : memref<16x512xf32, #tpu.memory_space<vmem>>, vector<16x512xf32>,
    return
  }
  func.func @transform_0(%arg0: i32) -> (i32, i32) {
    %c0_i32 = arith.constant 0 : i32
    %c0_i32_0 = arith.constant 0 : i32
    return %arg0, %c0_i32 : i32, i32
  }
  func.func @transform_1(%arg0: i32) -> (i32, i32) {
    %c0_i32 = arith.constant 0 : i32
    %c0_i32_0 = arith.constant 0 : i32
    %c0_i32_1 = arith.constant 0 : i32
    return %c0_i32, %c0_i32_0 : i32, i32
  }
  func.func @transform_2(%arg0: i32) -> (i32, i32) {
    %c0_i32 = arith.constant 0 : i32
    %c0_i32_0 = arith.constant 0 : i32
    %c0_i32_1 = arith.constant 0 : i32
    return %c0_i32, %c0_i32_0 : i32, i32
  }
  func.func @transform_3(%arg0: i32) -> (i32, i32) {
    %c0_i32 = arith.constant 0 : i32
    %c0_i32_0 = arith.constant 0 : i32
    return %arg0, %c0_i32 : i32, i32
  }
}

</mosaic_0001>

<llo_original>
// kernel: tpu_custom_call.1
$region0: #{tpu_custom_call.1}
  #allocation0 [shape = 'u32[]', space=smem, size = 0x4, offset = 0x4, fixed_abs, tag = 'smem constant byte address 0x4 - core index']
  #allocation1 [shape = 'u32[144,128]{1,0:T(1,128)}', space=vmem, size = 0x12000, scoped, tag = 'internal scratch']
  %s0 = inlined_call_operand.hbm [shape: f32[16,32], index: 0, kind: input, shape index: {}]
  %s1 = inlined_call_operand.hbm [shape: f32[32,512], index: 1, kind: input, shape index: {}]
  %s2 = inlined_call_operand.vmem [shape: f32[1,512], index: 2, kind: input, shape index: {}]
  %s3 = inlined_call_operand.hbm [shape: f32[16,512], index: 3, kind: output, shape index: {}]
  %s4 = sld [smem:[#allocation0]]
  $region30: #{tpu_custom_call.1} parent=0
    _
  %s6 = ssub.s32 1, %s4
  %s7 = scalar_select 0, %s6, %s4
  $region1: #{tpu_custom_call.1} parent=0
    #allocation2 [shape = 'u8[8192]{0}', space=vmem, size = 0x2000, scoped, tag = 'input window, operand 0, single buffered']
    #allocation3 [shape = 's32[1]{0}', space=sflag, size = 0x4, scoped, tag = 'scoped memory for tpu_custom_call.1']
    #allocation4 [shape = 's32[1]{0}', space=sflag, size = 0x4, scoped, tag = 'scoped memory for tpu_custom_call.1']
    #allocation5 [shape = 'u8[65536]{0}', space=vmem, size = 0x10000, scoped, tag = 'input window, operand 1, single buffered']
    #allocation6 [shape = 's32[1]{0}', space=sflag, size = 0x4, scoped, tag = 'scoped memory for tpu_custom_call.1']
    #allocation7 [shape = 'u8[32768]{0}', space=vmem, size = 0x8000, scoped, tag = 'output window, operand 0, single buffered']
    %8 = vsyncpa [#allocation3], 0
    %9 = vsyncpa [#allocation6], 0
    %10 = vsyncpa [#allocation4], 0
    // Predicated region
    $region2: #{tpu_custom_call.1} parent=1 // pred_check
      _
    $region3: #{tpu_custom_call.1} parent=1 // pred_check_branch
      %12 = sbr.rel (0) target = $region5
    $region4: #{tpu_custom_call.1} parent=1 // pred_region
      %s14 = ssub.s32 256, 256
      %15 = vsyncadd [#allocation3], %s14
      %s16 = sshll.u32 [#allocation2], 4
      %s17 = int_to_ptr.vmem [resolvable:$true] %s16
      %22 = dma.hbm_to_vmem [thread:$0]  %s0, 256, %s17, [#allocation3], 128, 128, 8
    $region5: #{tpu_custom_call.1} parent=1 // pred_fallthru
      _
    // Predicated region
    $region6: #{tpu_custom_call.1} parent=1 // pred_check
      _
    $region7: #{tpu_custom_call.1} parent=1 // pred_check_branch
      %24 = sbr.rel (0) target = $region9
    $region8: #{tpu_custom_call.1} parent=1 // pred_region
      %s26 = ssub.s32 2048, 2048
      %27 = vsyncadd [#allocation6], %s26
      %s28 = sshll.u32 [#allocation5], 4
      %s29 = int_to_ptr.vmem [resolvable:$true] %s28
      %34 = dma.hbm_to_vmem [thread:$0]  %s1, 2048, %s29, [#allocation6], 512, 512, 32
    $region9: #{tpu_custom_call.1} parent=1 // pred_fallthru
      _
    // Predicated region
    $region10: #{tpu_custom_call.1} parent=1 // pred_check
      _
    $region11: #{tpu_custom_call.1} parent=1 // pred_check_branch
      %36 = sbr.rel (0) target = $region13
    $region12: #{tpu_custom_call.1} parent=1 // pred_region
      _
    $region13: #{tpu_custom_call.1} parent=1 // pred_fallthru
      _
    // Predicated region
    $region14: #{tpu_custom_call.1} parent=1 // pred_check
      _
    $region15: #{tpu_custom_call.1} parent=1 // pred_check_branch
      %38 = sbr.rel (0) target = $region17
    $region16: #{tpu_custom_call.1} parent=1 // pred_region
      %39 = dma.done [#allocation3], 256
    $region17: #{tpu_custom_call.1} parent=1 // pred_fallthru
      _
    // Predicated region
    $region18: #{tpu_custom_call.1} parent=1 // pred_check
      _
    $region19: #{tpu_custom_call.1} parent=1 // pred_check_branch
      %41 = sbr.rel (0) target = $region21
    $region20: #{tpu_custom_call.1} parent=1 // pred_region
      %42 = dma.done [#allocation6], 2048
    $region21: #{tpu_custom_call.1} parent=1 // pred_fallthru
      _
    %v43 = vld [vmem:[#allocation2] sm:$0xff]
    %v44 = vld [vmem:[#allocation2 + $0x8] sm:$0xff]
    %v45 = vld [vmem:[#allocation5] sm:$0xff]
    %v46 = vld [vmem:[#allocation5 + $0x8] sm:$0xff]
    %v47 = vld [vmem:[#allocation5 + $0x10] sm:$0xff]
    %v48 = vld [vmem:[#allocation5 + $0x18] sm:$0xff]
    %v49 = vld [vmem:[#allocation5 + $0x20] sm:$0xff]
    %v50 = vld [vmem:[#allocation5 + $0x28] sm:$0xff]
    %v51 = vld [vmem:[#allocation5 + $0x30] sm:$0xff]
    %v52 = vld [vmem:[#allocation5 + $0x38] sm:$0xff]
    %v53 = vld [vmem:[#allocation5 + $0x40] sm:$0xff]
    %v54 = vld [vmem:[#allocation5 + $0x48] sm:$0xff]
    %v55 = vld [vmem:[#allocation5 + $0x50] sm:$0xff]
    %v56 = vld [vmem:[#allocation5 + $0x58] sm:$0xff]
    %v57 = vld [vmem:[#allocation5 + $0x60] sm:$0xff]
    %v58 = vld [vmem:[#allocation5 + $0x68] sm:$0xff]
    %v59 = vld [vmem:[#allocation5 + $0x70] sm:$0xff]
    %v60 = vld [vmem:[#allocation5 + $0x78] sm:$0xff]
    %v61 = vld [vmem:[%s2] sm:$0xf]
    %v63 = vlaneseq
    %v64 = vshrl.u32 %v63, 7
    %v65 = vsub.s32 0, %v64
    %v66 = vrot.slane %v61, %v65
    %v67 = vlaneseq
    %v68 = vshrl.u32 %v67, 7
    %v69 = vsub.s32 1, %v68
    %v70 = vrot.slane %v61, %v69
    %v71 = vlaneseq
    %v72 = vshrl.u32 %v71, 7
    %v73 = vsub.s32 2, %v72
    %v74 = vrot.slane %v61, %v73
    %v75 = vlaneseq
    %v76 = vshrl.u32 %v75, 7
    %v77 = vsub.s32 3, %v76
    %v78 = vrot.slane %v61, %v77
    %vm83 = vcmask 261120
    %v85 = vsel %vm83, %v43, 0
    %v88 = vsel %vm83, %v44, 0
    %90 = vmatprep.subr.mxu0 %v46
    %91 = vmatpush1.msra.mxu0 %v45
    %92 = vmatprep.subr.mxu0 %v50
    %93 = vmatpush1.msra.mxu0 %v49
    %94 = vmatprep.subr.mxu0 %v54
    %95 = vmatpush1.msra.mxu0 %v53
    %96 = vmatprep.subr.mxu0 %v58
    %97 = vmatpush1.msra.mxu0 %v57
    %98 = vmatprep.subr.mxu0 0.0
    %99 = vmatpush1.msra.mxu0 0.0
    %100 = vmatprep.subr.mxu0 0.0
    %101 = vmatpush1.msra.mxu0 0.0
    %102 = vmatprep.subr.mxu0 0.0
    %103 = vmatpush1.msra.mxu0 0.0
    %104 = vmatprep.subr.mxu0 0.0
    %105 = vmatpush1.msra.mxu0 0.0
    %106 = vmatprep.subr.mxu0 0.0
    %107 = vmatpush1.msra.mxu0 0.0
    %108 = vmatprep.subr.mxu0 0.0
    %109 = vmatpush1.msra.mxu0 0.0
    %110 = vmatprep.subr.mxu0 0.0
    %111 = vmatpush1.msra.mxu0 0.0
    %112 = vmatprep.subr.mxu0 0.0
    %113 = vmatpush1.msra.mxu0 0.0
    %114 = vmatprep.subr.mxu0 0.0
    %115 = vmatpush1.msra.mxu0 0.0
    %116 = vmatprep.subr.mxu0 0.0
    %117 = vmatpush1.msra.mxu0 0.0
    %118 = vmatprep.subr.mxu0 0.0
    %119 = vmatpush1.msra.mxu0 0.0
    %120 = vmatprep.subr.mxu0 0.0
    %121 = vmatpush1.msra.mxu0 0.0
    %122 = vmatprep.subr.mxu0 0.0
    %123 = vmatpush1.msra.mxu0 0.0
    %124 = vmatprep.subr.mxu0 0.0
    %125 = vmatpush1.msra.mxu0 0.0
    %126 = vmatprep.subr.mxu0 0.0
    %127 = vmatpush1.msra.mxu0 0.0
    %128 = vmatprep.subr.mxu0 0.0
    %129 = vmatpush1.msra.mxu0 0.0
    %130 = vmatprep.subr.mxu0 0.0
    %131 = vmatpush1.msra.mxu0 0.0
    %132 = vmatprep.subr.mxu0 0.0
    %133 = vmatpush1.msra.mxu0 0.0
    %134 = vmatprep.subr.mxu0 0.0
    %135 = vmatpush1.msra.mxu0 0.0
    %136 = vmatprep.subr.mxu0 0.0
    %137 = vmatpush1.msra.mxu0 0.0
    %138 = vmatprep.subr.mxu0 0.0
    %139 = vmatpush1.msra.mxu0 0.0
    %140 = vmatprep.subr.mxu0 0.0
    %141 = vmatpush1.msra.mxu0 0.0
    %142 = vmatprep.subr.mxu0 0.0
    %143 = vmatpush1.msra.mxu0 0.0
    %144 = vmatprep.subr.mxu0 0.0
    %145 = vmatpush1.msra.mxu0 0.0
    %146 = vmatprep.subr.mxu0 0.0
    %147 = vmatpush1.msra.mxu0 0.0
    %148 = vmatprep.subr.mxu0 0.0
    %149 = vmatpush1.msra.mxu0 0.0
    %150 = vmatprep.subr.mxu0 0.0
    %151 = vmatpush1.msra.mxu0 0.0
    %152 = vmatprep.subr.mxu0 0.0
    %153 = vmatpush1.msra.mxu0 0.0
    %154 = vmatprep.mubr.f32.mxu0 0.0
    %155 = vmatmul.mubr.f32.gmra.mrb[0].mxu0 %v85
    %v156 = vpop.f32.mrb[0].mxu0
    %v157 = vadd.f32 %v66, %v156
    %v158 = vpop.f32.mrb[0].mxu0
    %v159 = vadd.f32 %v70, %v158
    %160 = vmatprep.mubr.f32.mxu0 0.0
    %161 = vmatmul.mubr.f32.gmra.mrb[0].mxu0 %v88
    %v162 = vpop.f32.mrb[0].mxu0
    %v163 = vadd.f32 %v66, %v162
    %v164 = vpop.f32.mrb[0].mxu0
    %v165 = vadd.f32 %v70, %v164
    %166 = vdwg.mxu0
    %167 = vmatprep.subr.mxu0 %v48
    %168 = vmatpush1.msra.mxu0 %v47
    %169 = vmatprep.subr.mxu0 %v52
    %170 = vmatpush1.msra.mxu0 %v51
    %171 = vmatprep.subr.mxu0 %v56
    %172 = vmatpush1.msra.mxu0 %v55
    %173 = vmatprep.subr.mxu0 %v60
    %174 = vmatpush1.msra.mxu0 %v59
    %175 = vmatprep.subr.mxu0 0.0
    %176 = vmatpush1.msra.mxu0 0.0
    %177 = vmatprep.subr.mxu0 0.0
    %178 = vmatpush1.msra.mxu0 0.0
    %179 = vmatprep.subr.mxu0 0.0
    %180 = vmatpush1.msra.mxu0 0.0
    %181 = vmatprep.subr.mxu0 0.0
    %182 = vmatpush1.msra.mxu0 0.0
    %183 = vmatprep.subr.mxu0 0.0
    %184 = vmatpush1.msra.mxu0 0.0
    %185 = vmatprep.subr.mxu0 0.0
    %186 = vmatpush1.msra.mxu0 0.0
    %187 = vmatprep.subr.mxu0 0.0
    %188 = vmatpush1.msra.mxu0 0.0
    %189 = vmatprep.subr.mxu0 0.0
    %190 = vmatpush1.msra.mxu0 0.0
    %191 = vmatprep.subr.mxu0 0.0
    %192 = vmatpush1.msra.mxu0 0.0
    %193 = vmatprep.subr.mxu0 0.0
    %194 = vmatpush1.msra.mxu0 0.0
    %195 = vmatprep.subr.mxu0 0.0
    %196 = vmatpush1.msra.mxu0 0.0
    %197 = vmatprep.subr.mxu0 0.0
    %198 = vmatpush1.msra.mxu0 0.0
    %199 = vmatprep.subr.mxu0 0.0
    %200 = vmatpush1.msra.mxu0 0.0
    %201 = vmatprep.subr.mxu0 0.0
    %202 = vmatpush1.msra.mxu0 0.0
    %203 = vmatprep.subr.mxu0 0.0
    %204 = vmatpush1.msra.mxu0 0.0
    %205 = vmatprep.subr.mxu0 0.0
    %206 = vmatpush1.msra.mxu0 0.0
    %207 = vmatprep.subr.mxu0 0.0
    %208 = vmatpush1.msra.mxu0 0.0
    %209 = vmatprep.subr.mxu0 0.0
    %210 = vmatpush1.msra.mxu0 0.0
    %211 = vmatprep.subr.mxu0 0.0
    %212 = vmatpush1.msra.mxu0 0.0
    %213 = vmatprep.subr.mxu0 0.0
    %214 = vmatpush1.msra.mxu0 0.0
    %215 = vmatprep.subr.mxu0 0.0
    %216 = vmatpush1.msra.mxu0 0.0
    %217 = vmatprep.subr.mxu0 0.0
    %218 = vmatpush1.msra.mxu0 0.0
    %219 = vmatprep.subr.mxu0 0.0
    %220 = vmatpush1.msra.mxu0 0.0
    %221 = vmatprep.subr.mxu0 0.0
    %222 = vmatpush1.msra.mxu0 0.0
    %223 = vmatprep.subr.mxu0 0.0
    %224 = vmatpush1.msra.mxu0 0.0
    %225 = vmatprep.subr.mxu0 0.0
    %226 = vmatpush1.msra.mxu0 0.0
    %227 = vmatprep.subr.mxu0 0.0
    %228 = vmatpush1.msra.mxu0 0.0
    %229 = vmatprep.subr.mxu0 0.0
    %230 = vmatpush1.msra.mxu0 0.0
    %231 = vmatprep.mubr.f32.mxu0 0.0
    %232 = vmatmul.mubr.f32.gmra.mrb[0].mxu0 %v85
    %v233 = vpop.f32.mrb[0].mxu0
    %v234 = vadd.f32 %v74, %v233
    %v235 = vpop.f32.mrb[0].mxu0
    %v236 = vadd.f32 %v78, %v235
    %237 = vmatprep.mubr.f32.mxu0 0.0
    %238 = vmatmul.mubr.f32.gmra.mrb[0].mxu0 %v88
    %v239 = vpop.f32.mrb[0].mxu0
    %v240 = vadd.f32 %v74, %v239
    %v241 = vpop.f32.mrb[0].mxu0
    %v242 = vadd.f32 %v78, %v241
    %243 = vdwg.mxu0
    %v244 = vmax.f32 %v157, %v234
    %v245 = vmax.f32 %v159, %v236
    %v246 = vmax.f32 %v244, %v245
    %247 = vmax.xlane.f32.xlu0 %v246
    %v248 = vpop.xlane.xlu0 %247
    %v249 = vmax.f32 %v163, %v240
    %v250 = vmax.f32 %v165, %v242
    %v251 = vmax.f32 %v249, %v250
    %252 = vmax.xlane.f32.xlu0 %v251
    %v253 = vpop.xlane.xlu0 %252
    %v254 = vsub.f32 %v157, %v248
    %v255 = vsub.f32 %v159, %v248
    %v256 = vsub.f32 %v234, %v248
    %v257 = vsub.f32 %v236, %v248
    %v258 = vsub.f32 %v163, %v253
    %v259 = vsub.f32 %v165, %v253
    %v260 = vsub.f32 %v240, %v253
    %v261 = vsub.f32 %v242, %v253
    %v262 = vmul.f32 %v254, 1.442695
    %v263 = vpow.pop %v262
    %v264 = vmul.f32 %v255, 1.442695
    %v265 = vpow.pop %v264
    %v266 = vmul.f32 %v256, 1.442695
    %v267 = vpow.pop %v266
    %v268 = vmul.f32 %v257, 1.442695
    %v269 = vpow.pop %v268
    %v270 = vmul.f32 %v258, 1.442695
    %v271 = vpow.pop %v270
    %v272 = vmul.f32 %v259, 1.442695
    %v273 = vpow.pop %v272
    %v274 = vmul.f32 %v260, 1.442695
    %v275 = vpow.pop %v274
    %v276 = vmul.f32 %v261, 1.442695
    %v277 = vpow.pop %v276
    %v278 = vadd.f32 %v263, %v265
    %v279 = vadd.f32 %v278, %v267
    %v280 = vadd.f32 %v279, %v269
    %281 = vadd.xlane.f32.xlu0 %v280
    %v282 = vpop.xlane.xlu0 %281
    %v283 = vadd.f32 %v271, %v273
    %v284 = vadd.f32 %v283, %v275
    %v285 = vadd.f32 %v284, %v277
    %286 = vadd.xlane.f32.xlu0 %v285
    %v287 = vpop.xlane.xlu0 %286
    %v288 = vlog2.pop %v282
    %v289 = vmul.f32 %v288, 0.6931472
    %v290 = vlog2.pop %v287
    %v291 = vmul.f32 %v290, 0.6931472
    %v292 = vsub.f32 %v254, %v289
    %v293 = vsub.f32 %v255, %v289
    %v294 = vsub.f32 %v256, %v289
    %v295 = vsub.f32 %v257, %v289
    %v296 = vsub.f32 %v258, %v291
    %v297 = vsub.f32 %v259, %v291
    %v298 = vsub.f32 %v260, %v291
    %v299 = vsub.f32 %v261, %v291
    %300 = vst [vmem:[#allocation7] sm:$0xff] %v292
    %301 = vst [vmem:[#allocation7 + $0x8] sm:$0xff] %v293
    %302 = vst [vmem:[#allocation7 + $0x10] sm:$0xff] %v294
    %303 = vst [vmem:[#allocation7 + $0x18] sm:$0xff] %v295
    %304 = vst [vmem:[#allocation7 + $0x20] sm:$0xff] %v296
    %305 = vst [vmem:[#allocation7 + $0x28] sm:$0xff] %v297
    %306 = vst [vmem:[#allocation7 + $0x30] sm:$0xff] %v298
    %307 = vst [vmem:[#allocation7 + $0x38] sm:$0xff] %v299
    // Predicated region
    $region22: #{tpu_custom_call.1} parent=1 // pred_check
      _
    $region23: #{tpu_custom_call.1} parent=1 // pred_check_branch
      %309 = sbr.rel (0) target = $region25
    $region24: #{tpu_custom_call.1} parent=1 // pred_region
      %s311 = ssub.s32 1024, 1024
      %312 = vsyncadd [#allocation4], %s311
      %s313 = sshll.u32 [#allocation7], 4
      %s314 = int_to_ptr.vmem [resolvable:$true] %s313
      %319 = dma.vmem_to_hbm [thread:$0]  %s314, 1024, %s3, [#allocation4], 512, 512, 32
    $region25: #{tpu_custom_call.1} parent=1 // pred_fallthru
      _
    // Predicated region
    $region26: #{tpu_custom_call.1} parent=1 // pred_check
      _
    $region27: #{tpu_custom_call.1} parent=1 // pred_check_branch
      %321 = sbr.rel (0) target = $region29
    $region28: #{tpu_custom_call.1} parent=1 // pred_region
      %322 = dma.done [#allocation4], 1024
    $region29: #{tpu_custom_call.1} parent=1 // pred_fallthru
      _
    %323 = vsyncpa [#allocation3], 1
    %324 = vsyncpa [#allocation6], 1
    %325 = vsyncpa [#allocation4], 1

</llo_original>
